<compile_context>
chip_gen: v7x
topology: tpu7x:2x2x1
jax: 0.10.0
libtpu: 0.0.40
codegen_flags: <defaults>
</compile_context>

<pallas_src>
import numpy as np
import jax
import jax.numpy as jnp
from jax.experimental import pallas as pl
from jax.experimental.pallas import tpu as pltpu


# -----------------------------------------------------------------------------
# Deterministic "enable()" setup (synthetic parametrization, no checkpoint load)
# -----------------------------------------------------------------------------
PARAM_NAMES    = ["p0", "p1", "p2", "p3", "p4", "p5"]
FIXED_PARAMS   = {"p2": 0.3, "p5": -0.7}
BOUNDS_DEFAULT = [(-2.0, 2.0), (0.0, 1.0), (-1.0, 1.0),
                  (-3.0, 3.0), (0.5, 1.5), (-1.0, 1.0)]
EPS = 1e-6

N_TOTAL = len(PARAM_NAMES)

# _derive_default_params
params_default = np.zeros((N_TOTAL,), dtype=np.float32)
free_inds = []
for i_k, key in enumerate(PARAM_NAMES):
    if key in FIXED_PARAMS:
        params_default[i_k] = FIXED_PARAMS[key]
    else:
        free_inds.append(i_k)
free_inds = np.asarray(free_inds, dtype=np.int32)
N_FREE = len(free_inds)

bounds = np.asarray(BOUNDS_DEFAULT, dtype=np.float32)[free_inds]   # (n_free, 2)
lbounds = bounds[:, 0]
ubounds = bounds[:, 1]
bound_radius = (0.5 * (ubounds - lbounds)).astype(np.float32)
bound_centre = (0.5 * (ubounds + lbounds)).astype(np.float32)
assert np.all(bound_radius > 0.0), "degenerate bound (lo == hi) not supported"

# precomputed clamp bounds == saturation values of (x-c)/r -> hardtanh(+-(1-eps)) -> r*t+c
clip_lo = (bound_centre - bound_radius * np.float32(1.0 - EPS)).astype(np.float32)
clip_hi = (bound_centre + bound_radius * np.float32(1.0 - EPS)).astype(np.float32)

# lane-dense packing: PACK batch items per packed row (free row-major reshape)
PACK  = 64
IN_W  = PACK * N_FREE     # 256 lanes  (2 full vregs)
OUT_W = PACK * N_TOTAL    # 384 lanes  (3 full vregs)

# (1, W) constant rows: per-lane clip bounds and tiled fixed defaults (DMA'd once)
lo_row_np   = np.tile(clip_lo, PACK).reshape(1, IN_W).astype(np.float32)
hi_row_np   = np.tile(clip_hi, PACK).reshape(1, IN_W).astype(np.float32)
base_row_np = np.tile(params_default, PACK).reshape(1, OUT_W).astype(np.float32)

# block-diagonal one-hot scatter: input lane g*N_FREE+f -> output lane g*N_TOTAL+free_inds[f]
scatter_np = np.zeros((IN_W, OUT_W), dtype=np.float32)
for g in range(PACK):
    for f in range(N_FREE):
        scatter_np[g * N_FREE + f, g * N_TOTAL + int(free_inds[f])] = 1.0


# -----------------------------------------------------------------------------
# Pallas kernel
# -----------------------------------------------------------------------------
def parametrization_kernel(x_ref, lo_ref, hi_ref, smat_ref, base_ref, o_ref):
    x = x_ref[...]                                              # (TB, IN_W)

    # _clip_bounds: 2 VALU ops/element against precomputed constant bound rows.
    clipped = jnp.minimum(jnp.maximum(x, lo_ref[...]), hi_ref[...])

    # _set_fixed_params: block-diagonal one-hot scatter (MXU, K=256) + fixed defaults.
    # (v5e note: if a bundle dump shows this f32 matmul binding over the HBM stream,
    #  switch to a group-major packing + roll/select scatter; hidden on v6e/v7x.)
    full = jnp.dot(clipped, smat_ref[...], preferred_element_type=jnp.float32)
    o_ref[...] = full + base_ref[...]

    # derive_full_params: identity in the base class.


def _kernel_forward(x_packed, *, target_steps, min_block_rows, max_block_rows):
    """x_packed: (R, IN_W) f32, R = batch/PACK. Returns (R, OUT_W) f32."""
    R = x_packed.shape[0]

    # Tile selection: aim for >= target_steps grid steps, TB a multiple of 8,
    # clamped to [min_block_rows, max_block_rows] and never (much) larger than R.
    TB = max(min_block_rows, R // max(1, target_steps))
    TB = min(TB, max_block_rows)
    TB = min(TB, ((R + 7) // 8) * 8)
    TB = max(8, (TB // 8) * 8)
    grid = pl.cdiv(R, TB)            # ragged last block handled by clamped DMAs

    lo_row = jnp.asarray(lo_row_np)
    hi_row = jnp.asarray(hi_row_np)
    smat   = jnp.asarray(scatter_np)
    base   = jnp.asarray(base_row_np)

    # VMEM budget: 2x double-buffered in/out tiles + in-kernel temporaries + constants.
    io_bytes   = 4 * TB * (IN_W + OUT_W)
    vmem_need  = 4 * io_bytes + 8 * IN_W * OUT_W + (2 << 20)
    vmem_limit = int(min(max(vmem_need, 32 << 20), 60 << 20))

    cost = pl.CostEstimate(
        flops=2 * R * IN_W * OUT_W,
        transcendentals=0,
        bytes_accessed=4 * (R * (IN_W + OUT_W) + IN_W * OUT_W + 2 * IN_W + OUT_W),
    )

    return pl.pallas_call(
        parametrization_kernel,
        out_shape=jax.ShapeDtypeStruct((R, OUT_W), jnp.float32),
        grid=(grid,),
        in_specs=[
            pl.BlockSpec((TB, IN_W), lambda i: (i, 0)),
            pl.BlockSpec((1, IN_W), lambda i: (0, 0)),       # clip lo  (1 DMA total)
            pl.BlockSpec((1, IN_W), lambda i: (0, 0)),       # clip hi  (1 DMA total)
            pl.BlockSpec((IN_W, OUT_W), lambda i: (0, 0)),   # scatter  (1 DMA total)
            pl.BlockSpec((1, OUT_W), lambda i: (0, 0)),      # defaults (1 DMA total)
        ],
        out_specs=pl.BlockSpec((TB, OUT_W), lambda i: (i, 0)),
        compiler_params=pltpu.CompilerParams(
            dimension_semantics=("parallel",),               # both TCs on v7x
            vmem_limit_bytes=vmem_limit,
        ),
        cost_estimate=cost,
    )(x_packed, lo_row, hi_row, smat, base)


def _xla_forward(x):
    """Fused clip+scatter fallback for tiny batches / ragged tails (no kernel overhead)."""
    clipped = jnp.clip(x, jnp.asarray(clip_lo), jnp.asarray(clip_hi))
    out = jnp.tile(jnp.asarray(params_default), (x.shape[0], 1))
    return out.at[:, jnp.asarray(free_inds)].set(clipped)


def parametrization_forward(x, *, min_kernel_batch=PACK * 256, target_steps=8,
                            min_block_rows=256, max_block_rows=2048):
    """Parametrization.forward: x (batch, n_free) f32 -> (batch, n_total) f32."""
    x = x.astype(jnp.float32)
    B = x.shape[0]
    B_body = (B // PACK) * PACK

    # Small batches: fixed DMA/pipeline setup of a pallas_call can't win -> fused XLA.
    if B < min_kernel_batch or B_body == 0:
        return _xla_forward(x)

    # Aligned body: free row-major repack (B_body, N_FREE) -> (R, IN_W); no padding pass.
    body_packed = x[:B_body].reshape(B_body // PACK, IN_W)
    body = _kernel_forward(body_packed, target_steps=target_steps,
                           min_block_rows=min_block_rows,
                           max_block_rows=max_block_rows)
    body = body.reshape(B_body, N_TOTAL)          # free row-major un-pack
    if B_body == B:
        return body

    # Ragged tail (< PACK rows): tiny XLA path instead of padding the whole batch.
    tail = _xla_forward(x[B_body:])
    return jnp.concatenate([body, tail], axis=0)


# -----------------------------------------------------------------------------
# Pure-JAX reference (mirrors the PyTorch forward exactly)
# -----------------------------------------------------------------------------
def reference_forward(x):
    centre = jnp.asarray(bound_centre)
    radius = jnp.asarray(bound_radius)
    t = (x.astype(jnp.float32) - centre) / radius
    t = jnp.clip(t, -1.0 + EPS, 1.0 - EPS)
    clipped = radius * t + centre
    out = jnp.tile(jnp.asarray(params_default), (x.shape[0], 1))
    return out.at[:, jnp.asarray(free_inds)].set(clipped)


if __name__ == "__main__":
    key = jax.random.PRNGKey(0)
    k0, k1, k2 = jax.random.split(key, 3)

    # 1) tiny batch from the spec -> dispatch takes the fused XLA fast path
    x_small = 2.0 * jax.random.normal(k0, (2, N_FREE), dtype=jnp.float32)
    out_small = jax.block_until_ready(parametrization_forward(x_small))
    np.testing.assert_allclose(np.asarray(out_small),
                               np.asarray(reference_forward(x_small)),
                               rtol=1e-5, atol=1e-5)

    # 2) Pallas kernel path (forced) with a multi-step grid + ragged XLA tail:
    #    B=1061 -> body 1024 rows (R=16, TB=8, grid=2), tail 37 rows via XLA.
    x_mid = 2.0 * jax.random.normal(k1, (1061, N_FREE), dtype=jnp.float32)
    out_mid = jax.block_until_ready(
        parametrization_forward(x_mid, min_kernel_batch=0, min_block_rows=8))
    np.testing.assert_allclose(np.asarray(out_mid),
                               np.asarray(reference_forward(x_mid)),
                               rtol=1e-5, atol=1e-5)

    # 3) default dispatch hits the kernel: R=300, TB=256, grid=2 (partial last block)
    x_big = 2.0 * jax.random.normal(k2, (PACK * 300, N_FREE), dtype=jnp.float32)
    out_big = jax.block_until_ready(parametrization_forward(x_big))
    np.testing.assert_allclose(np.asarray(out_big),
                               np.asarray(reference_forward(x_big)),
                               rtol=1e-5, atol=1e-5)

    print("KERNEL_OK")
</pallas_src>

<mosaic_0001>
module attributes {stable_mosaic.version = 11 : i64} {
  func.func @parametrization_kernel(%arg0: i32, %arg1: memref<8x256xf32, #tpu.memory_space<vmem>>, %arg2: memref<1x256xf32, #tpu.memory_space<vmem>>, %arg3: memref<1x256xf32, #tpu.memory_space<vmem>>, %arg4: memref<256x384xf32, #tpu.memory_space<vmem>>, %arg5: memref<1x384xf32, #tpu.memory_space<vmem>>, %arg6: memref<8x384xf32, #tpu.memory_space<vmem>>) attributes {dimension_semantics = [#tpu.dimension_semantics<parallel>], iteration_bounds = array<i64: 2>, scalar_prefetch = 0 : i64, scratch_operands = 0 : i64, tpu.core_type = #tpu.core_type<tc>, window_params = [{transform_indices = @transform_0, window_bounds = array<i64: 8, 256>}, {pipeline_mode = #tpu.pipeline_mode<synchronous>, transform_indices = @transform_1, window_bounds = array<i64: 1, 256>}, {pipeline_mode = #tpu.pipeline_mode<synchronous>, transform_indices = @transform_2, window_bounds = array<i64: 1, 256>}, {pipeline_mode = #tpu.pipeline_mode<synchronous>, transform_indices = @transform_3, window_bounds = array<i64: 256, 384>}, {pipeline_mode = #tpu.pipeline_mode<synchronous>, transform_indices = @transform_4, window_bounds = array<i64: 1, 384>}, {transform_indices = @transform_5, window_bounds = array<i64: 8, 384>}]} {
    %c0 = arith.constant 0 : index
    %c0_0 = arith.constant 0 : index
    %0 = vector.load %arg1[%c0, %c0_0] : memref<8x256xf32, #tpu.memory_space<vmem>>, vector<8x256xf32>
    %c0_1 = arith.constant 0 : index
    %c0_2 = arith.constant 0 : index
    %1 = vector.load %arg2[%c0_1, %c0_2] : memref<1x256xf32, #tpu.memory_space<vmem>>, vector<1x256xf32>
    %2 = vector.broadcast %1 : vector<1x256xf32> to vector<8x256xf32>
    %3 = arith.maximumf %0, %2 : vector<8x256xf32>
    %c0_3 = arith.constant 0 : index
    %c0_4 = arith.constant 0 : index
    %4 = vector.load %arg3[%c0_3, %c0_4] : memref<1x256xf32, #tpu.memory_space<vmem>>, vector<1x256xf32>
    %5 = vector.broadcast %4 : vector<1x256xf32> to vector<8x256xf32>
    %6 = arith.minimumf %3, %5 : vector<8x256xf32>
    %c0_5 = arith.constant 0 : index
    %c0_6 = arith.constant 0 : index
    %7 = vector.load %arg4[%c0_5, %c0_6] : memref<256x384xf32, #tpu.memory_space<vmem>>, vector<256x384xf32>
    %cst = arith.constant dense<0.000000e+00> : vector<8x384xf32>
    %8 = tpu.matmul %6, %7, %cst {dimension_numbers = #tpu.dot_dimension_numbers<[1], [0], [0], [1], [0, 0, 1, 1], [], []>} : vector<8x256xf32>, vector<256x384xf32>, vector<8x384xf32> -> vector<8x384xf32>
    %c0_7 = arith.constant 0 : index
    %c0_8 = arith.constant 0 : index
    %9 = vector.load %arg5[%c0_7, %c0_8] : memref<1x384xf32, #tpu.memory_space<vmem>>, vector<1x384xf32>
    %10 = vector.broadcast %9 : vector<1x384xf32> to vector<8x384xf32>
    %11 = arith.addf %8, %10 : vector<8x384xf32>
    %c0_9 = arith.constant 0 : index
    %c0_10 = arith.constant 0 : index
    %12 = vector.load %arg6[%c0_9, %c0_10] : memref<8x384xf32, #tpu.memory_space<vmem>>, vector<8x384xf32>
    tpu.vector_store %arg6[%c0_9, %c0_10], %11 {strides = array<i32>} : memref<8x384xf32, #tpu.memory_space<vmem>>, vector<8x384xf32>,
    return
  }
  func.func @transform_0(%arg0: i32) -> (i32, i32) {
    %c0_i32 = arith.constant 0 : i32
    %c0_i32_0 = arith.constant 0 : i32
    return %arg0, %c0_i32 : i32, i32
  }
  func.func @transform_1(%arg0: i32) -> (i32, i32) {
    %c0_i32 = arith.constant 0 : i32
    %c0_i32_0 = arith.constant 0 : i32
    %c0_i32_1 = arith.constant 0 : i32
    return %c0_i32, %c0_i32_0 : i32, i32
  }
  func.func @transform_2(%arg0: i32) -> (i32, i32) {
    %c0_i32 = arith.constant 0 : i32
    %c0_i32_0 = arith.constant 0 : i32
    %c0_i32_1 = arith.constant 0 : i32
    return %c0_i32, %c0_i32_0 : i32, i32
  }
  func.func @transform_3(%arg0: i32) -> (i32, i32) {
    %c0_i32 = arith.constant 0 : i32
    %c0_i32_0 = arith.constant 0 : i32
    %c0_i32_1 = arith.constant 0 : i32
    return %c0_i32, %c0_i32_0 : i32, i32
  }
  func.func @transform_4(%arg0: i32) -> (i32, i32) {
    %c0_i32 = arith.constant 0 : i32
    %c0_i32_0 = arith.constant 0 : i32
    %c0_i32_1 = arith.constant 0 : i32
    return %c0_i32, %c0_i32_0 : i32, i32
  }
  func.func @transform_5(%arg0: i32) -> (i32, i32) {
    %c0_i32 = arith.constant 0 : i32
    %c0_i32_0 = arith.constant 0 : i32
    return %arg0, %c0_i32 : i32, i32
  }
}

</mosaic_0001>

<llo_original>
// kernel: tpu_custom_call.1
$region0: #{tpu_custom_call.1}
  #allocation0 [shape = 'u32[]', space=smem, size = 0x4, offset = 0x4, fixed_abs, tag = 'smem constant byte address 0x4 - core index']
  #allocation1 [shape = 'u32[144,128]{1,0:T(1,128)}', space=vmem, size = 0x12000, scoped, tag = 'internal scratch']
  %s0 = inlined_call_operand.hbm [shape: f32[16,256], index: 0, kind: input, shape index: {}]
  %s1 = inlined_call_operand.vmem [shape: f32[1,256], index: 1, kind: input, shape index: {}]
  %s2 = inlined_call_operand.vmem [shape: f32[1,256], index: 2, kind: input, shape index: {}]
  %s3 = inlined_call_operand.hbm [shape: f32[256,384], index: 3, kind: input, shape index: {}]
  %s4 = inlined_call_operand.vmem [shape: f32[1,384], index: 4, kind: input, shape index: {}]
  %s5 = inlined_call_operand.hbm [shape: f32[16,384], index: 5, kind: output, shape index: {}]
  %s6 = sld [smem:[#allocation0]]
  $region61: #{tpu_custom_call.1} parent=0
    _
  %s8 = ssub.s32 1, %s6
  %s9 = scalar_select 0, %s8, %s6
  $region1: #{tpu_custom_call.1} parent=0
    #allocation2 [shape = 'u8[16384]{0}', space=vmem, size = 0x4000, scoped, tag = 'input window, operand 0']
    #allocation3 [shape = 's32[2]{0}', space=sflag, size = 0x8, scoped, tag = 'scoped memory for tpu_custom_call.1']
    #allocation4 [shape = 's32[2]{0}', space=sflag, size = 0x8, scoped, tag = 'scoped memory for tpu_custom_call.1']
    #allocation5 [shape = 'u8[393216]{0}', space=vmem, size = 0x60000, scoped, tag = 'input window, operand 3, single buffered']
    #allocation6 [shape = 's32[1]{0}', space=sflag, size = 0x4, scoped, tag = 'scoped memory for tpu_custom_call.1']
    #allocation7 [shape = 'u8[24576]{0}', space=vmem, size = 0x6000, scoped, tag = 'output window, operand 0']
    %10 = vsyncpa [#allocation3], 0
    %s11 = scalar_lea.sflag [#allocation3], 1
    %12 = vsyncpa %s11, 0
    %13 = vsyncpa [#allocation6], 0
    %14 = vsyncpa [#allocation4], 0
    %s15 = scalar_lea.sflag [#allocation4], 1
    %16 = vsyncpa %s15, 0
    loop: start=0, step=1, limit=4
    $region2: #{tpu_custom_call.1} parent=1 // loop_pre_header
      _
    $region3: #{tpu_custom_call.1} parent=1 // loop_header
      %s18 = sphi 0, %s22
      %p19 = scmp.ge.s32.totalorder %s18, 4
      %s28 = sphi 0, %s30
      %s31 = sphi 0, %s28
      %s32 = sphi 0, %s31
      %s48 = sphi 0, %s32
      %s52 = sphi 0, %s52
      %s54 = sphi 0, %s52
      %s55 = sphi 0, %s54
      %s69 = sphi 0, %s55
      %s73 = sphi 0, %s73
      %s75 = sphi 0, %s73
      %s76 = sphi 0, %s75
      %s90 = sphi 0, %s76
      %s94 = sphi 0, %s94
      %s96 = sphi 0, %s94
      %s97 = sphi 0, %s96
      %s111 = sphi 0, %s97
      %s115 = sphi 0, %s115
      %s117 = sphi 0, %s115
      %s118 = sphi 0, %s117
      %s132 = sphi 0, %s118
      %s138 = sphi 0, %s140
      %s141 = sphi 0, %s138
      %s142 = sphi 0, %s141
      %s158 = sphi 0, %s142
    $region4: #{tpu_custom_call.1} parent=1 // loop_header_branch
      %21 = sbr.rel (%p19) target = $region8
    $region5: #{tpu_custom_call.1} parent=1 // loop_body
      %s23 = ssub.s32 %s18, 1
      %s24 = ssub.s32 %s18, 2
      %s25 = sadd.s32 %s18, 1
      %s26 = ssub.s32 %s18, %s25
      %p27 = scmp.eq.s32.totalorder %s26, 0
      %s29 = sadd.s32 %s28, 1
      %s30 = scalar_select %p27, %s28, %s29
      %p33 = pneg %p27
      %p34 = scmp.eq.s32.totalorder %s18, 1
      %p35 = por %p33, %p34
      %p36 = scmp.ne.s32.totalorder %s28, %s31
      %p37 = scmp.eq.s32.totalorder %s18, 0
      %p38 = por %p36, %p37
      %p39 = scmp.ne.s32.totalorder %s28, %s31
      %p40 = scmp.eq.s32.totalorder %s23, 1
      %p41 = por %p39, %p40
      %p42 = scmp.ne.s32.totalorder %s31, %s32
      %p43 = scmp.eq.s32.totalorder %s23, 0
      %p44 = por %p42, %p43
      %p45 = scmp.ne.s32.totalorder %s31, %s32
      %p46 = scmp.eq.s32.totalorder %s24, 1
      %p47 = por %p45, %p46
      %p49 = scmp.ne.s32.totalorder %s32, %s48
      %p50 = scmp.eq.s32.totalorder %s24, 0
      %p51 = por %p49, %p50
      %s53 = sadd.s32 %s52, 1
      %p56 = scmp.eq.s32.totalorder %s18, 1
      %p57 = scmp.ne.s32.totalorder %s52, %s54
      %p58 = scmp.eq.s32.totalorder %s18, 0
      %p59 = por %p57, %p58
      %p60 = scmp.ne.s32.totalorder %s52, %s54
      %p61 = scmp.eq.s32.totalorder %s23, 1
      %p62 = por %p60, %p61
      %p63 = scmp.ne.s32.totalorder %s54, %s55
      %p64 = scmp.eq.s32.totalorder %s23, 0
      %p65 = por %p63, %p64
      %p66 = scmp.ne.s32.totalorder %s54, %s55
      %p67 = scmp.eq.s32.totalorder %s24, 1
      %p68 = por %p66, %p67
      %p70 = scmp.ne.s32.totalorder %s55, %s69
      %p71 = scmp.eq.s32.totalorder %s24, 0
      %p72 = por %p70, %p71
      %s74 = sadd.s32 %s73, 1
      %p77 = scmp.eq.s32.totalorder %s18, 1
      %p78 = scmp.ne.s32.totalorder %s73, %s75
      %p79 = scmp.eq.s32.totalorder %s18, 0
      %p80 = por %p78, %p79
      %p81 = scmp.ne.s32.totalorder %s73, %s75
      %p82 = scmp.eq.s32.totalorder %s23, 1
      %p83 = por %p81, %p82
      %p84 = scmp.ne.s32.totalorder %s75, %s76
      %p85 = scmp.eq.s32.totalorder %s23, 0
      %p86 = por %p84, %p85
      %p87 = scmp.ne.s32.totalorder %s75, %s76
      %p88 = scmp.eq.s32.totalorder %s24, 1
      %p89 = por %p87, %p88
      %p91 = scmp.ne.s32.totalorder %s76, %s90
      %p92 = scmp.eq.s32.totalorder %s24, 0
      %p93 = por %p91, %p92
      %s95 = sadd.s32 %s94, 1
      %p98 = scmp.eq.s32.totalorder %s18, 1
      %p99 = scmp.ne.s32.totalorder %s94, %s96
      %p100 = scmp.eq.s32.totalorder %s18, 0
      %p101 = por %p99, %p100
      %p102 = scmp.ne.s32.totalorder %s94, %s96
      %p103 = scmp.eq.s32.totalorder %s23, 1
      %p104 = por %p102, %p103
      %p105 = scmp.ne.s32.totalorder %s96, %s97
      %p106 = scmp.eq.s32.totalorder %s23, 0
      %p107 = por %p105, %p106
      %p108 = scmp.ne.s32.totalorder %s96, %s97
      %p109 = scmp.eq.s32.totalorder %s24, 1
      %p110 = por %p108, %p109
      %p112 = scmp.ne.s32.totalorder %s97, %s111
      %p113 = scmp.eq.s32.totalorder %s24, 0
      %p114 = por %p112, %p113
      %s116 = sadd.s32 %s115, 1
      %p119 = scmp.eq.s32.totalorder %s18, 1
      %p120 = scmp.ne.s32.totalorder %s115, %s117
      %p121 = scmp.eq.s32.totalorder %s18, 0
      %p122 = por %p120, %p121
      %p123 = scmp.ne.s32.totalorder %s115, %s117
      %p124 = scmp.eq.s32.totalorder %s23, 1
      %p125 = por %p123, %p124
      %p126 = scmp.ne.s32.totalorder %s117, %s118
      %p127 = scmp.eq.s32.totalorder %s23, 0
      %p128 = por %p126, %p127
      %p129 = scmp.ne.s32.totalorder %s117, %s118
      %p130 = scmp.eq.s32.totalorder %s24, 1
      %p131 = por %p129, %p130
      %p133 = scmp.ne.s32.totalorder %s118, %s132
      %p134 = scmp.eq.s32.totalorder %s24, 0
      %p135 = por %p133, %p134
      %s136 = ssub.s32 %s18, %s25
      %p137 = scmp.eq.s32.totalorder %s136, 0
      %s139 = sadd.s32 %s138, 1
      %s140 = scalar_select %p137, %s138, %s139
      %p143 = pneg %p137
      %p144 = scmp.eq.s32.totalorder %s18, 1
      %p145 = por %p143, %p144
      %p146 = scmp.ne.s32.totalorder %s138, %s141
      %p147 = scmp.eq.s32.totalorder %s18, 0
      %p148 = por %p146, %p147
      %p149 = scmp.ne.s32.totalorder %s138, %s141
      %p150 = scmp.eq.s32.totalorder %s23, 1
      %p151 = por %p149, %p150
      %p152 = scmp.ne.s32.totalorder %s141, %s142
      %p153 = scmp.eq.s32.totalorder %s23, 0
      %p154 = por %p152, %p153
      %p155 = scmp.ne.s32.totalorder %s141, %s142
      %p156 = scmp.eq.s32.totalorder %s24, 1
      %p157 = por %p155, %p156
      %p159 = scmp.ne.s32.totalorder %s142, %s158
      %p160 = scmp.eq.s32.totalorder %s24, 0
      %p161 = por %p159, %p160
      %p162 = scmp.le.s32.totalorder 1, %s18
      %p163 = scmp.lt.s32.totalorder %s18, 3
      %p164 = pnand %p162, %p163
      %p165 = pneg %p164
      // Predicated region
      $region9: #{tpu_custom_call.1} parent=5 // pred_check
        _
      $region10: #{tpu_custom_call.1} parent=5 // pred_check_branch
        %167 = sbr.rel (%p164) target = $region12
      $region11: #{tpu_custom_call.1} parent=5 // pred_region
        %s168 = ssub.s32 %s18, 1
        // Predicated region
        $region13: #{tpu_custom_call.1} parent=11 // pred_check
          %p169 = pneg %p65
        $region14: #{tpu_custom_call.1} parent=11 // pred_check_branch
          %171 = sbr.rel (%p169) target = $region16
        $region15: #{tpu_custom_call.1} parent=11 // pred_region
          _
        $region16: #{tpu_custom_call.1} parent=11 // pred_fallthru
          _
        // Predicated region
        $region17: #{tpu_custom_call.1} parent=11 // pred_check
          %p172 = pneg %p86
        $region18: #{tpu_custom_call.1} parent=11 // pred_check_branch
          %174 = sbr.rel (%p172) target = $region20
        $region19: #{tpu_custom_call.1} parent=11 // pred_region
          _
        $region20: #{tpu_custom_call.1} parent=11 // pred_fallthru
          _
        // Predicated region
        $region21: #{tpu_custom_call.1} parent=11 // pred_check
          %p175 = pneg %p107
        $region22: #{tpu_custom_call.1} parent=11 // pred_check_branch
          %177 = sbr.rel (%p175) target = $region24
        $region23: #{tpu_custom_call.1} parent=11 // pred_region
          %s179 = ssub.s32 12288, 12288
          %180 = vsyncadd [#allocation6], %s179
          %s181 = sshll.u32 [#allocation5], 4
          %s182 = int_to_ptr.vmem [resolvable:$true] %s181
          %187 = dma.hbm_to_vmem [thread:$0]  %s3, 12288, %s182, [#allocation6], 384, 384, 24
        $region24: #{tpu_custom_call.1} parent=11 // pred_fallthru
          _
        // Predicated region
        $region25: #{tpu_custom_call.1} parent=11 // pred_check
          %p188 = pneg %p128
        $region26: #{tpu_custom_call.1} parent=11 // pred_check_branch
          %190 = sbr.rel (%p188) target = $region28
        $region27: #{tpu_custom_call.1} parent=11 // pred_region
          _
        $region28: #{tpu_custom_call.1} parent=11 // pred_fallthru
          _
      $region12: #{tpu_custom_call.1} parent=5 // pred_fallthru
        _
      %p191 = scmp.lt.s32.totalorder %s18, 2
      // Predicated region
      $region29: #{tpu_custom_call.1} parent=5 // pred_check
        %p192 = pneg %p191
      $region30: #{tpu_custom_call.1} parent=5 // pred_check_branch
        %194 = sbr.rel (%p192) target = $region32
      $region31: #{tpu_custom_call.1} parent=5 // pred_region
        // Predicated region
        $region33: #{tpu_custom_call.1} parent=31 // pred_check
          %p195 = pneg %p38
        $region34: #{tpu_custom_call.1} parent=31 // pred_check_branch
          %197 = sbr.rel (%p195) target = $region36
        $region35: #{tpu_custom_call.1} parent=31 // pred_region
          %s198 = sand.u32 %s28, 1
          %s199 = scalar_lea.sflag [#allocation3], %s198
          %s200 = sand.u32 %s28, 1
          %s201 = smul.addr %s200, 16
          %s202 = scalar_lea.vmem [#allocation2], %s201
          %s204 = ssub.s32 256, 256
          %205 = vsyncadd %s199, %s204
          %s206 = smul.addr %s18, 2
          %s207 = smul.addr %s206, 128
          %s208 = scalar_lea.hbm %s0, %s207
          %s210 = sshll.u32 %s202, 4
          %s211 = int_to_ptr.vmem [resolvable:$true] %s210
          %213 = dma.hbm_to_vmem [thread:$0]  %s208, 256, %s211, %s199
        $region36: #{tpu_custom_call.1} parent=31 // pred_fallthru
          _
      $region32: #{tpu_custom_call.1} parent=5 // pred_fallthru
        _
      %p214 = scmp.le.s32.totalorder 1, %s18
      %p215 = scmp.lt.s32.totalorder %s18, 3
      %p216 = pnand %p214, %p215
      %p217 = pneg %p216
      // Predicated region
      $region37: #{tpu_custom_call.1} parent=5 // pred_check
        _
      $region38: #{tpu_custom_call.1} parent=5 // pred_check_branch
        %219 = sbr.rel (%p216) target = $region40
      $region39: #{tpu_custom_call.1} parent=5 // pred_region
        %s220 = ssub.s32 %s18, 1
        %s221 = sand.u32 %s31, 1
        %s222 = scalar_lea.sflag [#allocation3], %s221
        %s223 = sand.u32 %s31, 1
        %s224 = smul.addr %s223, 16
        %s225 = scalar_lea.vmem [#allocation2], %s224
        // Predicated region
        $region41: #{tpu_custom_call.1} parent=39 // pred_check
          %p226 = pneg %p44
        $region42: #{tpu_custom_call.1} parent=39 // pred_check_branch
          %228 = sbr.rel (%p226) target = $region44
        $region43: #{tpu_custom_call.1} parent=39 // pred_region
          %229 = dma.done %s222, 256
        $region44: #{tpu_custom_call.1} parent=39 // pred_fallthru
          _
        // Predicated region
        $region45: #{tpu_custom_call.1} parent=39 // pred_check
          %p230 = pneg %p107
        $region46: #{tpu_custom_call.1} parent=39 // pred_check_branch
          %232 = sbr.rel (%p230) target = $region48
        $region47: #{tpu_custom_call.1} parent=39 // pred_region
          %233 = dma.done [#allocation6], 12288
        $region48: #{tpu_custom_call.1} parent=39 // pred_fallthru
          _
        %s234 = sand.u32 %s31, 1
        %s235 = scalar_lea.sflag [#allocation3], %s234
        %s236 = sand.u32 %s31, 1
        %s237 = smul.addr %s236, 16
        %s238 = scalar_lea.vmem [#allocation2], %s237
        %p239 = pneg %p44
        %p240 = pneg %p41
        %p241 = pneg %p65
        %p242 = pneg %p62
        %p243 = pneg %p86
        %p244 = pneg %p83
        %p245 = pneg %p107
        %p246 = pneg %p104
        %p247 = pneg %p128
        %p248 = pneg %p125
        %p249 = pneg %p154
        %p250 = pneg %p151
        %s251 = sand.u32 %s141, 1
        %s252 = scalar_lea.sflag [#allocation4], %s251
        %s253 = sand.u32 %s141, 1
        %s254 = smul.addr %s253, 24
        %s255 = scalar_lea.vmem [#allocation7], %s254
        %v256 = vld [vmem:[%s225] sm:$0xff]
        %v257 = vld [vmem:[%s225 + $0x8] sm:$0xff]
        %v258 = vld [vmem:[%s1] sm:$0x3]
        %v260 = vlaneseq
        %v261 = vshrl.u32 %v260, 7
        %v262 = vsub.s32 0, %v261
        %v263 = vrot.slane %v258, %v262
        %v264 = vlaneseq
        %v265 = vshrl.u32 %v264, 7
        %v266 = vsub.s32 1, %v265
        %v267 = vrot.slane %v258, %v266
        %v270 = vmax.f32 %v256, %v263
        %v271 = vmax.f32 %v257, %v267
        %v272 = vld [vmem:[%s2] sm:$0x3]
        %v274 = vlaneseq
        %v275 = vshrl.u32 %v274, 7
        %v276 = vsub.s32 0, %v275
        %v277 = vrot.slane %v272, %v276
        %v278 = vlaneseq
        %v279 = vshrl.u32 %v278, 7
        %v280 = vsub.s32 1, %v279
        %v281 = vrot.slane %v272, %v280
        %v284 = vmin.f32 %v270, %v277
        %v285 = vmin.f32 %v271, %v281
        %v286 = vld [vmem:[#allocation5] sm:$0xff]
        %v287 = vld [vmem:[#allocation5 + $0x8] sm:$0xff]
        %v288 = vld [vmem:[#allocation5 + $0x10] sm:$0xff]
        %v289 = vld [vmem:[#allocation5 + $0x18] sm:$0xff]
        %v290 = vld [vmem:[#allocation5 + $0x20] sm:$0xff]
        %v291 = vld [vmem:[#allocation5 + $0x28] sm:$0xff]
        %v292 = vld [vmem:[#allocation5 + $0x30] sm:$0xff]
        %v293 = vld [vmem:[#allocation5 + $0x38] sm:$0xff]
        %v294 = vld [vmem:[#allocation5 + $0x40] sm:$0xff]
        %v295 = vld [vmem:[#allocation5 + $0x48] sm:$0xff]
        %v296 = vld [vmem:[#allocation5 + $0x50] sm:$0xff]
        %v297 = vld [vmem:[#allocation5 + $0x58] sm:$0xff]
        %v298 = vld [vmem:[#allocation5 + $0x60] sm:$0xff]
        %v299 = vld [vmem:[#allocation5 + $0x68] sm:$0xff]
        %v300 = vld [vmem:[#allocation5 + $0x70] sm:$0xff]
        %v301 = vld [vmem:[#allocation5 + $0x78] sm:$0xff]
        %v302 = vld [vmem:[#allocation5 + $0x80] sm:$0xff]
        %v303 = vld [vmem:[#allocation5 + $0x88] sm:$0xff]
        %v304 = vld [vmem:[#allocation5 + $0x90] sm:$0xff]
        %v305 = vld [vmem:[#allocation5 + $0x98] sm:$0xff]
        %v306 = vld [vmem:[#allocation5 + $0xa0] sm:$0xff]
        %v307 = vld [vmem:[#allocation5 + $0xa8] sm:$0xff]
        %v308 = vld [vmem:[#allocation5 + $0xb0] sm:$0xff]
        %v309 = vld [vmem:[#allocation5 + $0xb8] sm:$0xff]
        %v310 = vld [vmem:[#allocation5 + $0xc0] sm:$0xff]
        %v311 = vld [vmem:[#allocation5 + $0xc8] sm:$0xff]
        %v312 = vld [vmem:[#allocation5 + $0xd0] sm:$0xff]
        %v313 = vld [vmem:[#allocation5 + $0xd8] sm:$0xff]
        %v314 = vld [vmem:[#allocation5 + $0xe0] sm:$0xff]
        %v315 = vld [vmem:[#allocation5 + $0xe8] sm:$0xff]
        %v316 = vld [vmem:[#allocation5 + $0xf0] sm:$0xff]
        %v317 = vld [vmem:[#allocation5 + $0xf8] sm:$0xff]
        %v318 = vld [vmem:[#allocation5 + $0x100] sm:$0xff]
        %v319 = vld [vmem:[#allocation5 + $0x108] sm:$0xff]
        %v320 = vld [vmem:[#allocation5 + $0x110] sm:$0xff]
        %v321 = vld [vmem:[#allocation5 + $0x118] sm:$0xff]
        %v322 = vld [vmem:[#allocation5 + $0x120] sm:$0xff]
        %v323 = vld [vmem:[#allocation5 + $0x128] sm:$0xff]
        %v324 = vld [vmem:[#allocation5 + $0x130] sm:$0xff]
        %v325 = vld [vmem:[#allocation5 + $0x138] sm:$0xff]
        %v326 = vld [vmem:[#allocation5 + $0x140] sm:$0xff]
        %v327 = vld [vmem:[#allocation5 + $0x148] sm:$0xff]
        %v328 = vld [vmem:[#allocation5 + $0x150] sm:$0xff]
        %v329 = vld [vmem:[#allocation5 + $0x158] sm:$0xff]
        %v330 = vld [vmem:[#allocation5 + $0x160] sm:$0xff]
        %v331 = vld [vmem:[#allocation5 + $0x168] sm:$0xff]
        %v332 = vld [vmem:[#allocation5 + $0x170] sm:$0xff]
        %v333 = vld [vmem:[#allocation5 + $0x178] sm:$0xff]
        %v334 = vld [vmem:[#allocation5 + $0x180] sm:$0xff]
        %v335 = vld [vmem:[#allocation5 + $0x188] sm:$0xff]
        %v336 = vld [vmem:[#allocation5 + $0x190] sm:$0xff]
        %v337 = vld [vmem:[#allocation5 + $0x198] sm:$0xff]
        %v338 = vld [vmem:[#allocation5 + $0x1a0] sm:$0xff]
        %v339 = vld [vmem:[#allocation5 + $0x1a8] sm:$0xff]
        %v340 = vld [vmem:[#allocation5 + $0x1b0] sm:$0xff]
        %v341 = vld [vmem:[#allocation5 + $0x1b8] sm:$0xff]
        %v342 = vld [vmem:[#allocation5 + $0x1c0] sm:$0xff]
        %v343 = vld [vmem:[#allocation5 + $0x1c8] sm:$0xff]
        %v344 = vld [vmem:[#allocation5 + $0x1d0] sm:$0xff]
        %v345 = vld [vmem:[#allocation5 + $0x1d8] sm:$0xff]
        %v346 = vld [vmem:[#allocation5 + $0x1e0] sm:$0xff]
        %v347 = vld [vmem:[#allocation5 + $0x1e8] sm:$0xff]
        %v348 = vld [vmem:[#allocation5 + $0x1f0] sm:$0xff]
        %v349 = vld [vmem:[#allocation5 + $0x1f8] sm:$0xff]
        %v350 = vld [vmem:[#allocation5 + $0x200] sm:$0xff]
        %v351 = vld [vmem:[#allocation5 + $0x208] sm:$0xff]
        %v352 = vld [vmem:[#allocation5 + $0x210] sm:$0xff]
        %v353 = vld [vmem:[#allocation5 + $0x218] sm:$0xff]
        %v354 = vld [vmem:[#allocation5 + $0x220] sm:$0xff]
        %v355 = vld [vmem:[#allocation5 + $0x228] sm:$0xff]
        %v356 = vld [vmem:[#allocation5 + $0x230] sm:$0xff]
        %v357 = vld [vmem:[#allocation5 + $0x238] sm:$0xff]
        %v358 = vld [vmem:[#allocation5 + $0x240] sm:$0xff]
        %v359 = vld [vmem:[#allocation5 + $0x248] sm:$0xff]
        %v360 = vld [vmem:[#allocation5 + $0x250] sm:$0xff]
        %v361 = vld [vmem:[#allocation5 + $0x258] sm:$0xff]
        %v362 = vld [vmem:[#allocation5 + $0x260] sm:$0xff]
        %v363 = vld [vmem:[#allocation5 + $0x268] sm:$0xff]
        %v364 = vld [vmem:[#allocation5 + $0x270] sm:$0xff]
        %v365 = vld [vmem:[#allocation5 + $0x278] sm:$0xff]
        %v366 = vld [vmem:[#allocation5 + $0x280] sm:$0xff]
        %v367 = vld [vmem:[#allocation5 + $0x288] sm:$0xff]
        %v368 = vld [vmem:[#allocation5 + $0x290] sm:$0xff]
        %v369 = vld [vmem:[#allocation5 + $0x298] sm:$0xff]
        %v370 = vld [vmem:[#allocation5 + $0x2a0] sm:$0xff]
        %v371 = vld [vmem:[#allocation5 + $0x2a8] sm:$0xff]
        %v372 = vld [vmem:[#allocation5 + $0x2b0] sm:$0xff]
        %v373 = vld [vmem:[#allocation5 + $0x2b8] sm:$0xff]
        %v374 = vld [vmem:[#allocation5 + $0x2c0] sm:$0xff]
        %v375 = vld [vmem:[#allocation5 + $0x2c8] sm:$0xff]
        %v376 = vld [vmem:[#allocation5 + $0x2d0] sm:$0xff]
        %v377 = vld [vmem:[#allocation5 + $0x2d8] sm:$0xff]
        %v378 = vld [vmem:[#allocation5 + $0x2e0] sm:$0xff]
        %v379 = vld [vmem:[#allocation5 + $0x2e8] sm:$0xff]
        %v380 = vld [vmem:[#allocation5 + $0x2f0] sm:$0xff]
        %v381 = vld [vmem:[#allocation5 + $0x2f8] sm:$0xff]
        %v382 = vld [vmem:[%s4] sm:$0x7]
        %v384 = vlaneseq
        %v385 = vshrl.u32 %v384, 7
        %v386 = vsub.s32 0, %v385
        %v387 = vrot.slane %v382, %v386
        %v388 = vlaneseq
        %v389 = vshrl.u32 %v388, 7
        %v390 = vsub.s32 1, %v389
        %v391 = vrot.slane %v382, %v390
        %v392 = vlaneseq
        %v393 = vshrl.u32 %v392, 7
        %v394 = vsub.s32 2, %v393
        %v395 = vrot.slane %v382, %v394
        %399 = vmatprep.subr.mxu0 %v287
        %400 = vmatpush1.msra.mxu0 %v286
        %401 = vmatprep.subr.mxu0 %v290
        %402 = vmatpush1.msra.mxu0 %v289
        %403 = vmatprep.subr.mxu0 %v293
        %404 = vmatpush1.msra.mxu0 %v292
        %405 = vmatprep.subr.mxu0 %v296
        %406 = vmatpush1.msra.mxu0 %v295
        %407 = vmatprep.subr.mxu0 %v299
        %408 = vmatpush1.msra.mxu0 %v298
        %409 = vmatprep.subr.mxu0 %v302
        %410 = vmatpush1.msra.mxu0 %v301
        %411 = vmatprep.subr.mxu0 %v305
        %412 = vmatpush1.msra.mxu0 %v304
        %413 = vmatprep.subr.mxu0 %v308
        %414 = vmatpush1.msra.mxu0 %v307
        %415 = vmatprep.subr.mxu0 %v311
        %416 = vmatpush1.msra.mxu0 %v310
        %417 = vmatprep.subr.mxu0 %v314
        %418 = vmatpush1.msra.mxu0 %v313
        %419 = vmatprep.subr.mxu0 %v317
        %420 = vmatpush1.msra.mxu0 %v316
        %421 = vmatprep.subr.mxu0 %v320
        %422 = vmatpush1.msra.mxu0 %v319
        %423 = vmatprep.subr.mxu0 %v323
        %424 = vmatpush1.msra.mxu0 %v322
        %425 = vmatprep.subr.mxu0 %v326
        %426 = vmatpush1.msra.mxu0 %v325
        %427 = vmatprep.subr.mxu0 %v329
        %428 = vmatpush1.msra.mxu0 %v328
        %429 = vmatprep.subr.mxu0 %v332
        %430 = vmatpush1.msra.mxu0 %v331
        %431 = vmatprep.subr.mxu0 %v335
        %432 = vmatpush1.msra.mxu0 %v334
        %433 = vmatprep.subr.mxu0 %v338
        %434 = vmatpush1.msra.mxu0 %v337
        %435 = vmatprep.subr.mxu0 %v341
        %436 = vmatpush1.msra.mxu0 %v340
        %437 = vmatprep.subr.mxu0 %v344
        %438 = vmatpush1.msra.mxu0 %v343
        %439 = vmatprep.subr.mxu0 %v347
        %440 = vmatpush1.msra.mxu0 %v346
        %441 = vmatprep.subr.mxu0 %v350
        %442 = vmatpush1.msra.mxu0 %v349
        %443 = vmatprep.subr.mxu0 %v353
        %444 = vmatpush1.msra.mxu0 %v352
        %445 = vmatprep.subr.mxu0 %v356
        %446 = vmatpush1.msra.mxu0 %v355
        %447 = vmatprep.subr.mxu0 %v359
        %448 = vmatpush1.msra.mxu0 %v358
        %449 = vmatprep.subr.mxu0 %v362
        %450 = vmatpush1.msra.mxu0 %v361
        %451 = vmatprep.subr.mxu0 %v365
        %452 = vmatpush1.msra.mxu0 %v364
        %453 = vmatprep.subr.mxu0 %v368
        %454 = vmatpush1.msra.mxu0 %v367
        %455 = vmatprep.subr.mxu0 %v371
        %456 = vmatpush1.msra.mxu0 %v370
        %457 = vmatprep.subr.mxu0 %v374
        %458 = vmatpush1.msra.mxu0 %v373
        %459 = vmatprep.subr.mxu0 %v377
        %460 = vmatpush1.msra.mxu0 %v376
        %461 = vmatprep.subr.mxu0 %v380
        %462 = vmatpush1.msra.mxu0 %v379
        %463 = vmatprep.mubr.f32.mxu0 %v285
        %464 = vmatmul.mubr.f32.gmra.mrb[0].mxu0 %v284
        %v465 = vpop.f32.mrb[0].mxu0
        %v466 = vadd.f32 %v387, %v465
        %v467 = vpop.f32.mrb[0].mxu0
        %v468 = vadd.f32 %v391, %v467
        %469 = vdwg.mxu0
        %470 = vmatprep.subr.mxu0 0.0
        %471 = vmatpush1.msra.mxu0 %v288
        %472 = vmatprep.subr.mxu0 0.0
        %473 = vmatpush1.msra.mxu0 %v291
        %474 = vmatprep.subr.mxu0 0.0
        %475 = vmatpush1.msra.mxu0 %v294
        %476 = vmatprep.subr.mxu0 0.0
        %477 = vmatpush1.msra.mxu0 %v297
        %478 = vmatprep.subr.mxu0 0.0
        %479 = vmatpush1.msra.mxu0 %v300
        %480 = vmatprep.subr.mxu0 0.0
        %481 = vmatpush1.msra.mxu0 %v303
        %482 = vmatprep.subr.mxu0 0.0
        %483 = vmatpush1.msra.mxu0 %v306
        %484 = vmatprep.subr.mxu0 0.0
        %485 = vmatpush1.msra.mxu0 %v309
        %486 = vmatprep.subr.mxu0 0.0
        %487 = vmatpush1.msra.mxu0 %v312
        %488 = vmatprep.subr.mxu0 0.0
        %489 = vmatpush1.msra.mxu0 %v315
        %490 = vmatprep.subr.mxu0 0.0
        %491 = vmatpush1.msra.mxu0 %v318
        %492 = vmatprep.subr.mxu0 0.0
        %493 = vmatpush1.msra.mxu0 %v321
        %494 = vmatprep.subr.mxu0 0.0
        %495 = vmatpush1.msra.mxu0 %v324
        %496 = vmatprep.subr.mxu0 0.0
        %497 = vmatpush1.msra.mxu0 %v327
        %498 = vmatprep.subr.mxu0 0.0
        %499 = vmatpush1.msra.mxu0 %v330
        %500 = vmatprep.subr.mxu0 0.0
        %501 = vmatpush1.msra.mxu0 %v333
        %502 = vmatprep.subr.mxu0 0.0
        %503 = vmatpush1.msra.mxu0 %v336
        %504 = vmatprep.subr.mxu0 0.0
        %505 = vmatpush1.msra.mxu0 %v339
        %506 = vmatprep.subr.mxu0 0.0
        %507 = vmatpush1.msra.mxu0 %v342
        %508 = vmatprep.subr.mxu0 0.0
        %509 = vmatpush1.msra.mxu0 %v345
        %510 = vmatprep.subr.mxu0 0.0
        %511 = vmatpush1.msra.mxu0 %v348
        %512 = vmatprep.subr.mxu0 0.0
        %513 = vmatpush1.msra.mxu0 %v351
        %514 = vmatprep.subr.mxu0 0.0
        %515 = vmatpush1.msra.mxu0 %v354
        %516 = vmatprep.subr.mxu0 0.0
        %517 = vmatpush1.msra.mxu0 %v357
        %518 = vmatprep.subr.mxu0 0.0
        %519 = vmatpush1.msra.mxu0 %v360
        %520 = vmatprep.subr.mxu0 0.0
        %521 = vmatpush1.msra.mxu0 %v363
        %522 = vmatprep.subr.mxu0 0.0
        %523 = vmatpush1.msra.mxu0 %v366
        %524 = vmatprep.subr.mxu0 0.0
        %525 = vmatpush1.msra.mxu0 %v369
        %526 = vmatprep.subr.mxu0 0.0
        %527 = vmatpush1.msra.mxu0 %v372
        %528 = vmatprep.subr.mxu0 0.0
        %529 = vmatpush1.msra.mxu0 %v375
        %530 = vmatprep.subr.mxu0 0.0
        %531 = vmatpush1.msra.mxu0 %v378
        %532 = vmatprep.subr.mxu0 0.0
        %533 = vmatpush1.msra.mxu0 %v381
        %534 = vmatprep.mubr.f32.mxu0 %v285
        %535 = vmatmul.mubr.f32.gmra.mrb[0].mxu0 %v284
        %v536 = vpop.f32.mrb[0].mxu0
        %v537 = vadd.f32 %v395, %v536
        %v538 = vpop.f32.mrb[0].mxu0
        %539 = vdwg.mxu0
        %540 = vst [vmem:[%s255] sm:$0xff] %v466
        %541 = vst [vmem:[%s255 + $0x8] sm:$0xff] %v468
        %542 = vst [vmem:[%s255 + $0x10] sm:$0xff] %v537
        %s543 = sand.u32 %s141, 1
        %s544 = scalar_lea.sflag [#allocation4], %s543
        %s545 = sand.u32 %s141, 1
        %s546 = smul.addr %s545, 24
        %s547 = scalar_lea.vmem [#allocation7], %s546
        // Predicated region
        $region49: #{tpu_custom_call.1} parent=39 // pred_check
          %p548 = pneg %p151
        $region50: #{tpu_custom_call.1} parent=39 // pred_check_branch
          %550 = sbr.rel (%p548) target = $region52
        $region51: #{tpu_custom_call.1} parent=39 // pred_region
          %s552 = ssub.s32 384, 384
          %553 = vsyncadd %s544, %s552
          %s554 = smul.addr %s23, 3
          %s555 = smul.addr %s554, 128
          %s556 = scalar_lea.hbm %s5, %s555
          %s558 = sshll.u32 %s547, 4
          %s559 = int_to_ptr.vmem [resolvable:$true] %s558
          %561 = dma.vmem_to_hbm [thread:$0]  %s559, 384, %s556, %s544
        $region52: #{tpu_custom_call.1} parent=39 // pred_fallthru
          _
      $region40: #{tpu_custom_call.1} parent=5 // pred_fallthru
        _
      %p562 = scmp.le.s32.totalorder 2, %s18
      // Predicated region
      $region53: #{tpu_custom_call.1} parent=5 // pred_check
        %p563 = pneg %p562
      $region54: #{tpu_custom_call.1} parent=5 // pred_check_branch
        %565 = sbr.rel (%p563) target = $region56
      $region55: #{tpu_custom_call.1} parent=5 // pred_region
        %s566 = ssub.s32 %s18, 2
        // Predicated region
        $region57: #{tpu_custom_call.1} parent=55 // pred_check
          %p567 = pneg %p157
        $region58: #{tpu_custom_call.1} parent=55 // pred_check_branch
          %569 = sbr.rel (%p567) target = $region60
        $region59: #{tpu_custom_call.1} parent=55 // pred_region
          %s570 = sand.u32 %s142, 1
          %s571 = scalar_lea.sflag [#allocation4], %s570
          %s572 = sand.u32 %s142, 1
          %s573 = smul.addr %s572, 24
          %s574 = scalar_lea.vmem [#allocation7], %s573
          %575 = dma.done %s571, 384
        $region60: #{tpu_custom_call.1} parent=55 // pred_fallthru
          _
      $region56: #{tpu_custom_call.1} parent=5 // pred_fallthru
        _
    $region6: #{tpu_custom_call.1} parent=1 // loop_footer
      %s22 = sadd.s32 1, %s18
    $region7: #{tpu_custom_call.1} parent=1 // loop_footer_branch
      %17 = sbr.rel target = $region3
    $region8: #{tpu_custom_call.1} parent=1 // loop_exit
      _
    %576 = vsyncpa [#allocation3], 1
    %s577 = scalar_lea.sflag [#allocation3], 1
    %578 = vsyncpa %s577, 1
    %579 = vsyncpa [#allocation6], 1
    %580 = vsyncpa [#allocation4], 1
    %s581 = scalar_lea.sflag [#allocation4], 1
    %582 = vsyncpa %s581, 1

</llo_original>
